<compile_context>
chip_gen: v6e
topology: v6e:2x2x1
jax: 0.10.0
libtpu: 0.0.40
codegen_flags: <defaults>
</compile_context>

<pallas_src>
import math

import jax
import jax.numpy as jnp
from jax.experimental import pallas as pl
from jax.experimental.pallas import tpu as pltpu


def _round_up(x, m):
    return (x + m - 1) // m * m


# ----------------------------------------------------------------------------- #
# Fused Pallas kernel: out = adj_blockdiag @ (X @ W) + bias, one grid step per
# graph chunk.  Everything is VMEM resident; straight-line body, no scratch.
# ----------------------------------------------------------------------------- #
def _fused_gcn_bias_kernel(adj_ref, x_ref, w_ref, b_ref, o_ref):
    support = jnp.dot(x_ref[...], w_ref[...],
                      preferred_element_type=jnp.float32).astype(jnp.bfloat16)
    out = jnp.dot(adj_ref[...], support, preferred_element_type=jnp.float32)
    o_ref[...] = (out + b_ref[...]).astype(o_ref.dtype)


def _fused_gcn_nobias_kernel(adj_ref, x_ref, w_ref, o_ref):
    support = jnp.dot(x_ref[...], w_ref[...],
                      preferred_element_type=jnp.float32).astype(jnp.bfloat16)
    o_ref[...] = jnp.dot(adj_ref[...], support,
                         preferred_element_type=jnp.float32).astype(o_ref.dtype)


def plan_gcn(B, L, E, num_chunks=2):
    """Chunking/padding plan shared by the block-diag adjacency and every layer.

    num_chunks >= 2 keeps a 'parallel' grid axis so v7x can shard chunks over
    its two TensorCores; on single-TC v5e/v6e the extra step is negligible.
    Graphs-per-chunk is rounded up so the stacked row dim M = GCP * Ep is a
    multiple of 128: every matmul dim is then MXU/vreg aligned.
    """
    G = B * L
    nc = max(1, min(num_chunks, G))
    Ep = _round_up(E, 16)                      # bf16 sublane packing
    gc = -(-G // nc)                           # graphs per chunk (ceil)
    gcp = _round_up(gc, 128 // math.gcd(Ep, 128))
    return {"G": G, "NC": nc, "Ep": Ep, "GCP": gcp, "M": gcp * Ep}


def build_block_diag_adj(seq_adjs, plan):
    """[B, L, E, E] adjacency -> [NC, M, M] bf16 block-diagonal chunks.

    Block-diagonal stacking batches GCP graphs into a single MXU matmul per
    chunk (the zero off-diagonal FLOPs are free at this scale).  Built once per
    forward pass and reused by every GCN layer.
    """
    B, L, E, _ = seq_adjs.shape
    G, nc, Ep, gcp, M = (plan[k] for k in ("G", "NC", "Ep", "GCP", "M"))
    adj = seq_adjs.reshape(G, E, E).astype(jnp.bfloat16)
    adj = jnp.pad(adj, ((0, nc * gcp - G), (0, Ep - E), (0, Ep - E)))
    adj = adj.reshape(nc, gcp, Ep, Ep)
    eye = jnp.eye(gcp, dtype=jnp.bfloat16)
    bd = adj[:, :, :, None, :] * eye[None, :, None, :, None]   # [NC,GCP,Ep,GCP,Ep]
    return bd.reshape(nc, M, M)


def gcn_layer(x, adj_bd, weight, bias, plan):
    """GraphConvolution.forward: adj @ (x @ weight) + bias, fused in one kernel.

    x: [B, L, E, Fin] (f32 or bf16), adj_bd: [NC, M, M] bf16 block-diag chunks,
    weight: [Fin, Fout], bias: [Fout] or None.  Returns bf16 [B, L, E, Fout].
    """
    B, L, E, Fin = x.shape
    Fout = weight.shape[1]
    G, nc, Ep, gcp, M = (plan[k] for k in ("G", "NC", "Ep", "GCP", "M"))
    Fin_p = _round_up(Fin, 128)
    Fp = _round_up(Fout, 128)                 # lane-dense output stores

    xg = x.reshape(G, E, Fin).astype(jnp.bfloat16)
    xg = jnp.pad(xg, ((0, nc * gcp - G), (0, Ep - E), (0, Fin_p - Fin)))
    xc = xg.reshape(nc, M, Fin_p)

    w_p = jnp.pad(weight.astype(jnp.bfloat16),
                  ((0, Fin_p - Fin), (0, Fp - Fout)))

    in_specs = [
        pl.BlockSpec((None, M, M), lambda n: (n, 0, 0)),        # adj block-diag chunk
        pl.BlockSpec((None, M, Fin_p), lambda n: (n, 0, 0)),    # X chunk
        pl.BlockSpec((Fin_p, Fp), lambda n: (0, 0)),            # W (same block each step)
    ]
    args = [adj_bd, xc, w_p]
    if bias is not None:
        b_p = jnp.pad(bias.astype(jnp.float32), (0, Fp - Fout)).reshape(1, Fp)
        in_specs.append(pl.BlockSpec((1, Fp), lambda n: (0, 0)))
        args.append(b_p)
        kernel = _fused_gcn_bias_kernel
    else:
        kernel = _fused_gcn_nobias_kernel

    flops = 2 * nc * (M * Fin_p * Fp + M * M * Fp)
    bytes_accessed = 2 * (nc * M * M + nc * M * Fin_p + Fin_p * Fp
                          + nc * M * Fp) + 4 * Fp

    out = pl.pallas_call(
        kernel,
        out_shape=jax.ShapeDtypeStruct((nc, M, Fp), jnp.bfloat16),
        grid_spec=pltpu.PrefetchScalarGridSpec(
            num_scalar_prefetch=0,
            grid=(nc,),
            in_specs=in_specs,
            out_specs=pl.BlockSpec((None, M, Fp), lambda n: (n, 0, 0)),
        ),
        compiler_params=pltpu.CompilerParams(
            dimension_semantics=("parallel",),
        ),
        cost_estimate=pl.CostEstimate(
            flops=flops, transcendentals=0, bytes_accessed=bytes_accessed),
    )(*args)

    out = out.reshape(nc * gcp, Ep, Fp)[:G, :E, :Fout]
    return out.reshape(B, L, E, Fout)


def gcn_layer_reference(x, adj, weight, bias):
    """Plain-JAX reference mirroring the kernel's mixed precision exactly."""
    support = jnp.einsum(
        "blef,fo->bleo", x.astype(jnp.bfloat16), weight.astype(jnp.bfloat16),
        preferred_element_type=jnp.float32).astype(jnp.bfloat16)
    out = jnp.einsum(
        "blij,bljo->blio", adj.astype(jnp.bfloat16), support,
        preferred_element_type=jnp.float32)
    if bias is not None:
        out = out + bias.astype(jnp.float32)
    return out.astype(jnp.bfloat16)


# ----------------------------------------------------------------------------- #
# Full GraphEncoder forward (embedding gather + fused GCN kernel + attention head)
# ----------------------------------------------------------------------------- #
def graph_encoder_forward(params, seq_neighbors, seq_adjs, user_ids, use_pallas=True):
    emb_table = params["entity_user_emb"]
    input_state = jnp.take(emb_table, seq_neighbors, axis=0)     # [B, L, E, emb]
    B, L, E, _ = input_state.shape

    x = input_state
    if use_pallas:
        plan = plan_gcn(B, L, E, num_chunks=2)
        adj_bd = build_block_diag_adj(seq_adjs, plan)            # built once, reused
        for w, b in params["gnns"]:
            x = gcn_layer(x, adj_bd, w, b, plan)                 # bf16 [B, L, E, H]
    else:
        for w, b in params["gnns"]:
            x = gcn_layer_reference(x, seq_adjs, w, b)
    output_state = x

    # node-0 readout; B == 1 so .squeeze() -> [L, H]
    seq_embeddings = output_state[:, :, 0, :].astype(jnp.float32)
    H = seq_embeddings.shape[-1]
    seq_embeddings = seq_embeddings.reshape(L, H)

    user_emb = jnp.take(emb_table, user_ids, axis=0)[0]          # [emb]
    items = seq_embeddings.T                                     # [H, L]
    right = items @ params["attention_weights"]                  # [H]
    middle = user_emb * right                                    # [H]

    # TODO(synk): this tiny readout + Linear(60, 20) head stays in XLA — per-call
    # Pallas overhead exceeds its compute at these shapes.
    flat = jnp.concatenate([user_emb, middle, right], axis=0).reshape(-1)   # [60]
    return flat @ params["layer1_w"].T + params["layer1_b"]                 # [20]


# ----------------------------------------------------------------------------- #
# Parameter / data construction (deterministic, in-script)
# ----------------------------------------------------------------------------- #
def init_graph_encoder_params(key, n_entity, n_user, emb_size, hiddim, layers, n_items):
    keys = jax.random.split(key, 6)
    emb = 0.3 * jax.random.normal(keys[0], (n_entity + n_user, emb_size), jnp.float32)

    gnns = []
    indim = emb_size
    kk = keys[1]
    for _ in range(layers):
        kk, kw, kwc, kb = jax.random.split(kk, 4)
        stdv = 1.0 / math.sqrt(hiddim)
        w = jax.random.uniform(kw, (indim, hiddim), minval=-stdv, maxval=stdv)
        # weight_concat exists in the PyTorch module but is unused by forward();
        # initialized for parity, never enters any kernel.
        _w_concat = jax.random.uniform(kwc, (indim * 2, hiddim), minval=-stdv, maxval=stdv)
        b = jax.random.uniform(kb, (hiddim,), minval=-stdv, maxval=stdv)
        gnns.append((w, b))
        indim = hiddim

    attention_weights = 0.1 * jax.random.uniform(keys[2], (n_items,), dtype=jnp.float32)
    lim = 1.0 / math.sqrt(3 * hiddim)
    layer1_w = jax.random.uniform(keys[3], (20, 3 * hiddim), minval=-lim, maxval=lim)
    layer1_b = jax.random.uniform(keys[4], (20,), minval=-lim, maxval=lim)

    return {
        "entity_user_emb": emb,
        "gnns": gnns,
        "attention_weights": attention_weights,
        "layer1_w": layer1_w,
        "layer1_b": layer1_b,
    }


def build_seq_graphs(key, L, E, n_entity):
    """Synthetic star graphs mirroring GraphConstructer.get_graph:
    adj[0, i] = adj[i, 0] = adj[i, i] = 1 for each present neighbor."""
    neighbors, adjs = [], []
    keys = jax.random.split(key, L)
    for l in range(L):
        k1, k2 = jax.random.split(keys[l])
        deg = int(jax.random.randint(k1, (), 3, E + 1))          # nodes present
        ids = jax.random.randint(k2, (E,), 0, n_entity)
        present = jnp.arange(E) < deg
        node_row = jnp.where(present, ids, 0)
        pm = present.astype(jnp.float32)
        adj = jnp.zeros((E, E), jnp.float32)
        adj = adj.at[0, :].set(pm)
        adj = adj.at[:, 0].set(pm)
        adj = jnp.clip(adj + jnp.diag(pm), 0.0, 1.0)
        neighbors.append(node_row)
        adjs.append(adj)
    seq_neighbors = jnp.stack(neighbors)[None]                   # [1, L, E]
    seq_adjs = jnp.stack(adjs)[None]                             # [1, L, E, E]
    return seq_neighbors, seq_adjs


if __name__ == "__main__":
    key = jax.random.PRNGKey(0)
    B, L, E = 1, 10, 16              # batch=1 sequence, n_items=10, max_nodes=16
    emb_size = hiddim = 20           # forced by Linear(60, 20) and user_emb * right
    n_entity, n_user, layers = 200, 40, 1

    k_params, k_graph, _ = jax.random.split(key, 3)
    params = init_graph_encoder_params(k_params, n_entity, n_user,
                                       emb_size, hiddim, layers, n_items=L)
    seq_neighbors, seq_adjs = build_seq_graphs(k_graph, L, E, n_entity)
    user_ids = jnp.array([n_entity + 3], dtype=jnp.int32)

    # --- 1) Fused GCN Pallas kernel vs precision-mirrored JAX reference ---------
    input_state = jnp.take(params["entity_user_emb"], seq_neighbors, axis=0)
    w0, b0 = params["gnns"][0]
    plan = plan_gcn(B, L, E, num_chunks=2)
    adj_bd = build_block_diag_adj(seq_adjs, plan)
    out_k = jax.block_until_ready(gcn_layer(input_state, adj_bd, w0, b0, plan))
    out_r = gcn_layer_reference(input_state, seq_adjs, w0, b0)
    assert out_k.shape == (B, L, E, hiddim)
    diff = jnp.max(jnp.abs(out_k.astype(jnp.float32) - out_r.astype(jnp.float32)))
    assert jnp.allclose(out_k.astype(jnp.float32), out_r.astype(jnp.float32),
                        atol=2e-2, rtol=2e-2), float(diff)

    # --- 2) Full GraphEncoder forward through the fused Pallas GCN --------------
    out = jax.block_until_ready(
        graph_encoder_forward(params, seq_neighbors, seq_adjs, user_ids, use_pallas=True))
    ref = graph_encoder_forward(params, seq_neighbors, seq_adjs, user_ids, use_pallas=False)
    assert out.shape == (20,)
    assert bool(jnp.all(jnp.isfinite(out)))
    assert jnp.allclose(out, ref, atol=5e-2, rtol=5e-2), \
        float(jnp.max(jnp.abs(out - ref)))

    print("KERNEL_OK")
</pallas_src>

<mosaic_0001>
module attributes {stable_mosaic.version = 11 : i64} {
  func.func @_fused_gcn_bias_kernel(%arg0: i32, %arg1: memref<1x128x128xbf16, #tpu.memory_space<vmem>>, %arg2: memref<1x128x128xbf16, #tpu.memory_space<vmem>>, %arg3: memref<128x128xbf16, #tpu.memory_space<vmem>>, %arg4: memref<1x128xf32, #tpu.memory_space<vmem>>, %arg5: memref<1x128x128xbf16, #tpu.memory_space<vmem>>) attributes {dimension_semantics = [#tpu.dimension_semantics<parallel>], iteration_bounds = array<i64: 2>, scalar_prefetch = 0 : i64, scratch_operands = 0 : i64, tpu.core_type = #tpu.core_type<tc>, window_params = [{transform_indices = @transform_0, window_bounds = array<i64: 1, 128, 128>}, {transform_indices = @transform_1, window_bounds = array<i64: 1, 128, 128>}, {pipeline_mode = #tpu.pipeline_mode<synchronous>, transform_indices = @transform_2, window_bounds = array<i64: 128, 128>}, {pipeline_mode = #tpu.pipeline_mode<synchronous>, transform_indices = @transform_3, window_bounds = array<i64: 1, 128>}, {transform_indices = @transform_4, window_bounds = array<i64: 1, 128, 128>}]} {
    %c0 = arith.constant 0 : index
    %c0_0 = arith.constant 0 : index
    %c0_1 = arith.constant 0 : index
    %0 = vector.load %arg2[%c0, %c0_0, %c0_1] : memref<1x128x128xbf16, #tpu.memory_space<vmem>>, vector<1x128x128xbf16>
    %1 = vector.shape_cast %0 : vector<1x128x128xbf16> to vector<128x128xbf16>
    %c0_2 = arith.constant 0 : index
    %c0_3 = arith.constant 0 : index
    %2 = vector.load %arg3[%c0_2, %c0_3] : memref<128x128xbf16, #tpu.memory_space<vmem>>, vector<128x128xbf16>
    %cst = arith.constant dense<0.000000e+00> : vector<128x128xf32>
    %3 = tpu.matmul %1, %2, %cst {dimension_numbers = #tpu.dot_dimension_numbers<[1], [0], [0], [1], [0, 0, 1, 1], [], []>} : vector<128x128xbf16>, vector<128x128xbf16>, vector<128x128xf32> -> vector<128x128xf32>
    %4 = arith.truncf %3 : vector<128x128xf32> to vector<128x128xbf16>
    %c0_4 = arith.constant 0 : index
    %c0_5 = arith.constant 0 : index
    %c0_6 = arith.constant 0 : index
    %5 = vector.load %arg1[%c0_4, %c0_5, %c0_6] : memref<1x128x128xbf16, #tpu.memory_space<vmem>>, vector<1x128x128xbf16>
    %6 = vector.shape_cast %5 : vector<1x128x128xbf16> to vector<128x128xbf16>
    %cst_7 = arith.constant dense<0.000000e+00> : vector<128x128xf32>
    %7 = tpu.matmul %6, %4, %cst_7 {dimension_numbers = #tpu.dot_dimension_numbers<[1], [0], [0], [1], [0, 0, 1, 1], [], []>} : vector<128x128xbf16>, vector<128x128xbf16>, vector<128x128xf32> -> vector<128x128xf32>
    %c0_8 = arith.constant 0 : index
    %c0_9 = arith.constant 0 : index
    %8 = vector.load %arg4[%c0_8, %c0_9] : memref<1x128xf32, #tpu.memory_space<vmem>>, vector<1x128xf32>
    %9 = vector.broadcast %8 : vector<1x128xf32> to vector<128x128xf32>
    %10 = arith.addf %7, %9 : vector<128x128xf32>
    %11 = arith.truncf %10 : vector<128x128xf32> to vector<128x128xbf16>
    %c0_10 = arith.constant 0 : index
    %c0_11 = arith.constant 0 : index
    %c0_12 = arith.constant 0 : index
    %12 = vector.load %arg5[%c0_10, %c0_11, %c0_12] : memref<1x128x128xbf16, #tpu.memory_space<vmem>>, vector<1x128x128xbf16>
    %13 = vector.shape_cast %12 : vector<1x128x128xbf16> to vector<128x128xbf16>
    %14 = vector.shape_cast %11 : vector<128x128xbf16> to vector<1x128x128xbf16>
    tpu.vector_store %arg5[%c0_10, %c0_11, %c0_12], %14 {strides = array<i32>} : memref<1x128x128xbf16, #tpu.memory_space<vmem>>, vector<1x128x128xbf16>,
    return
  }
  func.func @transform_0(%arg0: i32) -> (i32, i32, i32) {
    %c0_i32 = arith.constant 0 : i32
    %c0_i32_0 = arith.constant 0 : i32
    %c0_i32_1 = arith.constant 0 : i32
    return %arg0, %c0_i32, %c0_i32_0 : i32, i32, i32
  }
  func.func @transform_1(%arg0: i32) -> (i32, i32, i32) {
    %c0_i32 = arith.constant 0 : i32
    %c0_i32_0 = arith.constant 0 : i32
    %c0_i32_1 = arith.constant 0 : i32
    return %arg0, %c0_i32, %c0_i32_0 : i32, i32, i32
  }
  func.func @transform_2(%arg0: i32) -> (i32, i32) {
    %c0_i32 = arith.constant 0 : i32
    %c0_i32_0 = arith.constant 0 : i32
    %c0_i32_1 = arith.constant 0 : i32
    return %c0_i32, %c0_i32_0 : i32, i32
  }
  func.func @transform_3(%arg0: i32) -> (i32, i32) {
    %c0_i32 = arith.constant 0 : i32
    %c0_i32_0 = arith.constant 0 : i32
    %c0_i32_1 = arith.constant 0 : i32
    return %c0_i32, %c0_i32_0 : i32, i32
  }
  func.func @transform_4(%arg0: i32) -> (i32, i32, i32) {
    %c0_i32 = arith.constant 0 : i32
    %c0_i32_0 = arith.constant 0 : i32
    %c0_i32_1 = arith.constant 0 : i32
    return %arg0, %c0_i32, %c0_i32_0 : i32, i32, i32
  }
}

</mosaic_0001>

<llo_original>
// kernel: tpu_custom_call.1
$region0: #{tpu_custom_call.1}
  #allocation0 [shape = 'u32[]', space=smem, size = 0x4, offset = 0x4, fixed_abs, tag = 'smem constant byte address 0x4 - core index']
  #allocation1 [shape = 'u32[144,128]{1,0:T(1,128)}', space=vmem, size = 0x12000, scoped, tag = 'internal scratch']
  %s0 = inlined_call_operand.hbm [shape: bf16[2,128,128], index: 0, kind: input, shape index: {}]
  %s1 = inlined_call_operand.hbm [shape: bf16[2,128,128], index: 1, kind: input, shape index: {}]
  %s2 = inlined_call_operand.hbm [shape: bf16[128,128], index: 2, kind: input, shape index: {}]
  %s3 = inlined_call_operand.vmem [shape: f32[1,128], index: 3, kind: input, shape index: {}]
  %s4 = inlined_call_operand.hbm [shape: bf16[2,128,128], index: 4, kind: output, shape index: {}]
  %s5 = sld [smem:[#allocation0]]
  $region61: #{tpu_custom_call.1} parent=0
    _
  %s7 = ssub.s32 1, %s5
  %s8 = scalar_select 0, %s7, %s5
  $region1: #{tpu_custom_call.1} parent=0
    #allocation2 [shape = 'u8[65536]{0}', space=vmem, size = 0x10000, scoped, tag = 'input window, operand 0']
    #allocation3 [shape = 's32[2]{0}', space=sflag, size = 0x8, scoped, tag = 'scoped memory for tpu_custom_call.1']
    #allocation4 [shape = 's32[2]{0}', space=sflag, size = 0x8, scoped, tag = 'scoped memory for tpu_custom_call.1']
    #allocation5 [shape = 'u8[65536]{0}', space=vmem, size = 0x10000, scoped, tag = 'input window, operand 1']
    #allocation6 [shape = 's32[2]{0}', space=sflag, size = 0x8, scoped, tag = 'scoped memory for tpu_custom_call.1']
    #allocation7 [shape = 'u8[32768]{0}', space=vmem, size = 0x8000, scoped, tag = 'input window, operand 2, single buffered']
    #allocation8 [shape = 'u8[65536]{0}', space=vmem, size = 0x10000, scoped, tag = 'output window, operand 0']
    %9 = vsyncpa [#allocation3], 0
    %s10 = scalar_lea.sflag [#allocation3], 1
    %11 = vsyncpa %s10, 0
    %12 = vsyncpa [#allocation6], 0
    %s13 = scalar_lea.sflag [#allocation6], 1
    %14 = vsyncpa %s13, 0
    %15 = vsyncpa [#allocation4], 0
    %s16 = scalar_lea.sflag [#allocation4], 1
    %17 = vsyncpa %s16, 0
    loop: start=0, step=1, limit=4
    $region2: #{tpu_custom_call.1} parent=1 // loop_pre_header
      _
    $region3: #{tpu_custom_call.1} parent=1 // loop_header
      %s19 = sphi 0, %s23
      %p20 = scmp.ge.s32.totalorder %s19, 4
      %s29 = sphi 0, %s31
      %s32 = sphi 0, %s29
      %s33 = sphi 0, %s32
      %s49 = sphi 0, %s33
      %s55 = sphi 0, %s57
      %s58 = sphi 0, %s55
      %s59 = sphi 0, %s58
      %s75 = sphi 0, %s59
      %s79 = sphi 0, %s79
      %s81 = sphi 0, %s79
      %s82 = sphi 0, %s81
      %s96 = sphi 0, %s82
      %s100 = sphi 0, %s100
      %s102 = sphi 0, %s100
      %s103 = sphi 0, %s102
      %s117 = sphi 0, %s103
      %s123 = sphi 0, %s125
      %s126 = sphi 0, %s123
      %s127 = sphi 0, %s126
      %s143 = sphi 0, %s127
    $region4: #{tpu_custom_call.1} parent=1 // loop_header_branch
      %22 = sbr.rel (%p20) target = $region8
    $region5: #{tpu_custom_call.1} parent=1 // loop_body
      %s24 = ssub.s32 %s19, 1
      %s25 = ssub.s32 %s19, 2
      %s26 = sadd.s32 %s19, 1
      %s27 = ssub.s32 %s19, %s26
      %p28 = scmp.eq.s32.totalorder %s27, 0
      %s30 = sadd.s32 %s29, 1
      %s31 = scalar_select %p28, %s29, %s30
      %p34 = pneg %p28
      %p35 = scmp.eq.s32.totalorder %s19, 1
      %p36 = por %p34, %p35
      %p37 = scmp.ne.s32.totalorder %s29, %s32
      %p38 = scmp.eq.s32.totalorder %s19, 0
      %p39 = por %p37, %p38
      %p40 = scmp.ne.s32.totalorder %s29, %s32
      %p41 = scmp.eq.s32.totalorder %s24, 1
      %p42 = por %p40, %p41
      %p43 = scmp.ne.s32.totalorder %s32, %s33
      %p44 = scmp.eq.s32.totalorder %s24, 0
      %p45 = por %p43, %p44
      %p46 = scmp.ne.s32.totalorder %s32, %s33
      %p47 = scmp.eq.s32.totalorder %s25, 1
      %p48 = por %p46, %p47
      %p50 = scmp.ne.s32.totalorder %s33, %s49
      %p51 = scmp.eq.s32.totalorder %s25, 0
      %p52 = por %p50, %p51
      %s53 = ssub.s32 %s19, %s26
      %p54 = scmp.eq.s32.totalorder %s53, 0
      %s56 = sadd.s32 %s55, 1
      %s57 = scalar_select %p54, %s55, %s56
      %p60 = pneg %p54
      %p61 = scmp.eq.s32.totalorder %s19, 1
      %p62 = por %p60, %p61
      %p63 = scmp.ne.s32.totalorder %s55, %s58
      %p64 = scmp.eq.s32.totalorder %s19, 0
      %p65 = por %p63, %p64
      %p66 = scmp.ne.s32.totalorder %s55, %s58
      %p67 = scmp.eq.s32.totalorder %s24, 1
      %p68 = por %p66, %p67
      %p69 = scmp.ne.s32.totalorder %s58, %s59
      %p70 = scmp.eq.s32.totalorder %s24, 0
      %p71 = por %p69, %p70
      %p72 = scmp.ne.s32.totalorder %s58, %s59
      %p73 = scmp.eq.s32.totalorder %s25, 1
      %p74 = por %p72, %p73
      %p76 = scmp.ne.s32.totalorder %s59, %s75
      %p77 = scmp.eq.s32.totalorder %s25, 0
      %p78 = por %p76, %p77
      %s80 = sadd.s32 %s79, 1
      %p83 = scmp.eq.s32.totalorder %s19, 1
      %p84 = scmp.ne.s32.totalorder %s79, %s81
      %p85 = scmp.eq.s32.totalorder %s19, 0
      %p86 = por %p84, %p85
      %p87 = scmp.ne.s32.totalorder %s79, %s81
      %p88 = scmp.eq.s32.totalorder %s24, 1
      %p89 = por %p87, %p88
      %p90 = scmp.ne.s32.totalorder %s81, %s82
      %p91 = scmp.eq.s32.totalorder %s24, 0
      %p92 = por %p90, %p91
      %p93 = scmp.ne.s32.totalorder %s81, %s82
      %p94 = scmp.eq.s32.totalorder %s25, 1
      %p95 = por %p93, %p94
      %p97 = scmp.ne.s32.totalorder %s82, %s96
      %p98 = scmp.eq.s32.totalorder %s25, 0
      %p99 = por %p97, %p98
      %s101 = sadd.s32 %s100, 1
      %p104 = scmp.eq.s32.totalorder %s19, 1
      %p105 = scmp.ne.s32.totalorder %s100, %s102
      %p106 = scmp.eq.s32.totalorder %s19, 0
      %p107 = por %p105, %p106
      %p108 = scmp.ne.s32.totalorder %s100, %s102
      %p109 = scmp.eq.s32.totalorder %s24, 1
      %p110 = por %p108, %p109
      %p111 = scmp.ne.s32.totalorder %s102, %s103
      %p112 = scmp.eq.s32.totalorder %s24, 0
      %p113 = por %p111, %p112
      %p114 = scmp.ne.s32.totalorder %s102, %s103
      %p115 = scmp.eq.s32.totalorder %s25, 1
      %p116 = por %p114, %p115
      %p118 = scmp.ne.s32.totalorder %s103, %s117
      %p119 = scmp.eq.s32.totalorder %s25, 0
      %p120 = por %p118, %p119
      %s121 = ssub.s32 %s19, %s26
      %p122 = scmp.eq.s32.totalorder %s121, 0
      %s124 = sadd.s32 %s123, 1
      %s125 = scalar_select %p122, %s123, %s124
      %p128 = pneg %p122
      %p129 = scmp.eq.s32.totalorder %s19, 1
      %p130 = por %p128, %p129
      %p131 = scmp.ne.s32.totalorder %s123, %s126
      %p132 = scmp.eq.s32.totalorder %s19, 0
      %p133 = por %p131, %p132
      %p134 = scmp.ne.s32.totalorder %s123, %s126
      %p135 = scmp.eq.s32.totalorder %s24, 1
      %p136 = por %p134, %p135
      %p137 = scmp.ne.s32.totalorder %s126, %s127
      %p138 = scmp.eq.s32.totalorder %s24, 0
      %p139 = por %p137, %p138
      %p140 = scmp.ne.s32.totalorder %s126, %s127
      %p141 = scmp.eq.s32.totalorder %s25, 1
      %p142 = por %p140, %p141
      %p144 = scmp.ne.s32.totalorder %s127, %s143
      %p145 = scmp.eq.s32.totalorder %s25, 0
      %p146 = por %p144, %p145
      %p147 = scmp.le.s32.totalorder 1, %s19
      %p148 = scmp.lt.s32.totalorder %s19, 3
      %p149 = pnand %p147, %p148
      %p150 = pneg %p149
      // Predicated region
      $region9: #{tpu_custom_call.1} parent=5 // pred_check
        _
      $region10: #{tpu_custom_call.1} parent=5 // pred_check_branch
        %152 = sbr.rel (%p149) target = $region12
      $region11: #{tpu_custom_call.1} parent=5 // pred_region
        %s153 = ssub.s32 %s19, 1
        // Predicated region
        $region13: #{tpu_custom_call.1} parent=11 // pred_check
          %p154 = pneg %p92
        $region14: #{tpu_custom_call.1} parent=11 // pred_check_branch
          %156 = sbr.rel (%p154) target = $region16
        $region15: #{tpu_custom_call.1} parent=11 // pred_region
          %s158 = ssub.s32 1024, 1024
          %159 = vsyncadd [#allocation6], %s158
          %s160 = sshll.u32 [#allocation7], 4
          %s161 = int_to_ptr.vmem [resolvable:$true] %s160
          %166 = dma.hbm_to_vmem [thread:$0]  %s2, 1024, %s161, [#allocation6], 64, 64, 4
        $region16: #{tpu_custom_call.1} parent=11 // pred_fallthru
          _
        // Predicated region
        $region17: #{tpu_custom_call.1} parent=11 // pred_check
          %p167 = pneg %p113
        $region18: #{tpu_custom_call.1} parent=11 // pred_check_branch
          %169 = sbr.rel (%p167) target = $region20
        $region19: #{tpu_custom_call.1} parent=11 // pred_region
          _
        $region20: #{tpu_custom_call.1} parent=11 // pred_fallthru
          _
      $region12: #{tpu_custom_call.1} parent=5 // pred_fallthru
        _
      %p170 = scmp.lt.s32.totalorder %s19, 2
      // Predicated region
      $region21: #{tpu_custom_call.1} parent=5 // pred_check
        %p171 = pneg %p170
      $region22: #{tpu_custom_call.1} parent=5 // pred_check_branch
        %173 = sbr.rel (%p171) target = $region24
      $region23: #{tpu_custom_call.1} parent=5 // pred_region
        // Predicated region
        $region25: #{tpu_custom_call.1} parent=23 // pred_check
          %p174 = pneg %p39
        $region26: #{tpu_custom_call.1} parent=23 // pred_check_branch
          %176 = sbr.rel (%p174) target = $region28
        $region27: #{tpu_custom_call.1} parent=23 // pred_region
          %s177 = sand.u32 %s29, 1
          %s178 = scalar_lea.sflag [#allocation3], %s177
          %s179 = sand.u32 %s29, 1
          %s180 = smul.addr %s179, 64
          %s181 = scalar_lea.vmem [#allocation2], %s180
          %s183 = ssub.s32 1024, 1024
          %184 = vsyncadd %s178, %s183
          %s185 = smul.addr %s19, 16
          %s186 = smul.addr %s185, 64
          %s187 = scalar_lea.hbm %s0, %s186
          %s188 = sshll.u32 %s181, 4
          %s189 = int_to_ptr.vmem [resolvable:$true] %s188
          %194 = dma.hbm_to_vmem [thread:$0]  %s187, 1024, %s189, %s178, 64, 64, 4
        $region28: #{tpu_custom_call.1} parent=23 // pred_fallthru
          _
        // Predicated region
        $region29: #{tpu_custom_call.1} parent=23 // pred_check
          %p195 = pneg %p65
        $region30: #{tpu_custom_call.1} parent=23 // pred_check_branch
          %197 = sbr.rel (%p195) target = $region32
        $region31: #{tpu_custom_call.1} parent=23 // pred_region
          %s198 = sand.u32 %s19, 1
          %s199 = scalar_lea.sflag [#allocation6], %s198
          %s200 = sand.u32 %s55, 1
          %s201 = smul.addr %s200, 64
          %s202 = scalar_lea.vmem [#allocation5], %s201
          %s204 = ssub.s32 1024, 1024
          %205 = vsyncadd %s199, %s204
          %s206 = smul.addr %s19, 16
          %s207 = smul.addr %s206, 64
          %s208 = scalar_lea.hbm %s1, %s207
          %s209 = sshll.u32 %s202, 4
          %s210 = int_to_ptr.vmem [resolvable:$true] %s209
          %215 = dma.hbm_to_vmem [thread:$0]  %s208, 1024, %s210, %s199, 64, 64, 4
        $region32: #{tpu_custom_call.1} parent=23 // pred_fallthru
          _
      $region24: #{tpu_custom_call.1} parent=5 // pred_fallthru
        _
      %p216 = scmp.le.s32.totalorder 1, %s19
      %p217 = scmp.lt.s32.totalorder %s19, 3
      %p218 = pnand %p216, %p217
      %p219 = pneg %p218
      // Predicated region
      $region33: #{tpu_custom_call.1} parent=5 // pred_check
        _
      $region34: #{tpu_custom_call.1} parent=5 // pred_check_branch
        %221 = sbr.rel (%p218) target = $region36
      $region35: #{tpu_custom_call.1} parent=5 // pred_region
        %s222 = ssub.s32 %s19, 1
        %s223 = sand.u32 %s32, 1
        %s224 = scalar_lea.sflag [#allocation3], %s223
        %s225 = sand.u32 %s32, 1
        %s226 = smul.addr %s225, 64
        %s227 = scalar_lea.vmem [#allocation2], %s226
        // Predicated region
        $region37: #{tpu_custom_call.1} parent=35 // pred_check
          %p228 = pneg %p45
        $region38: #{tpu_custom_call.1} parent=35 // pred_check_branch
          %230 = sbr.rel (%p228) target = $region40
        $region39: #{tpu_custom_call.1} parent=35 // pred_region
          %231 = dma.done %s224, 1024
        $region40: #{tpu_custom_call.1} parent=35 // pred_fallthru
          _
        %s232 = sand.u32 %s24, 1
        %s233 = scalar_lea.sflag [#allocation6], %s232
        %s234 = sand.u32 %s58, 1
        %s235 = smul.addr %s234, 64
        %s236 = scalar_lea.vmem [#allocation5], %s235
        // Predicated region
        $region41: #{tpu_custom_call.1} parent=35 // pred_check
          %p237 = pneg %p71
        $region42: #{tpu_custom_call.1} parent=35 // pred_check_branch
          %239 = sbr.rel (%p237) target = $region44
        $region43: #{tpu_custom_call.1} parent=35 // pred_region
          %240 = dma.done %s233, 1024
        $region44: #{tpu_custom_call.1} parent=35 // pred_fallthru
          _
        // Predicated region
        $region45: #{tpu_custom_call.1} parent=35 // pred_check
          %p241 = pneg %p92
        $region46: #{tpu_custom_call.1} parent=35 // pred_check_branch
          %243 = sbr.rel (%p241) target = $region48
        $region47: #{tpu_custom_call.1} parent=35 // pred_region
          %244 = dma.done [#allocation6], 1024
        $region48: #{tpu_custom_call.1} parent=35 // pred_fallthru
          _
        %s245 = sand.u32 %s32, 1
        %s246 = scalar_lea.sflag [#allocation3], %s245
        %s247 = sand.u32 %s32, 1
        %s248 = smul.addr %s247, 64
        %s249 = scalar_lea.vmem [#allocation2], %s248
        %p250 = pneg %p45
        %p251 = pneg %p42
        %s252 = sand.u32 %s24, 1
        %s253 = scalar_lea.sflag [#allocation6], %s252
        %s254 = sand.u32 %s58, 1
        %s255 = smul.addr %s254, 64
        %s256 = scalar_lea.vmem [#allocation5], %s255
        %p257 = pneg %p71
        %p258 = pneg %p68
        %p259 = pneg %p92
        %p260 = pneg %p89
        %p261 = pneg %p113
        %p262 = pneg %p110
        %p263 = pneg %p139
        %p264 = pneg %p136
        %s265 = sand.u32 %s126, 1
        %s266 = scalar_lea.sflag [#allocation4], %s265
        %s267 = sand.u32 %s126, 1
        %s268 = smul.addr %s267, 64
        %s269 = scalar_lea.vmem [#allocation8], %s268
        %v271 = vld [vmem:[%s236] sm:$0xf]
        %v272 = vld [vmem:[%s236 + $0x4] sm:$0xf]
        %v273 = vld [vmem:[%s236 + $0x8] sm:$0xf]
        %v274 = vld [vmem:[%s236 + $0xc] sm:$0xf]
        %v275 = vld [vmem:[%s236 + $0x10] sm:$0xf]
        %v276 = vld [vmem:[%s236 + $0x14] sm:$0xf]
        %v277 = vld [vmem:[%s236 + $0x18] sm:$0xf]
        %v278 = vld [vmem:[%s236 + $0x1c] sm:$0xf]
        %v279 = vld [vmem:[%s236 + $0x20] sm:$0xf]
        %v280 = vld [vmem:[%s236 + $0x24] sm:$0xf]
        %v281 = vld [vmem:[%s236 + $0x28] sm:$0xf]
        %v282 = vld [vmem:[%s236 + $0x2c] sm:$0xf]
        %v283 = vld [vmem:[%s236 + $0x30] sm:$0xf]
        %v284 = vld [vmem:[%s236 + $0x34] sm:$0xf]
        %v285 = vld [vmem:[%s236 + $0x38] sm:$0xf]
        %v286 = vld [vmem:[%s236 + $0x3c] sm:$0xf]
        %v287 = vld [vmem:[#allocation7] sm:$0xf]
        %v288 = vld [vmem:[#allocation7 + $0x4] sm:$0xf]
        %v289 = vld [vmem:[#allocation7 + $0x8] sm:$0xf]
        %v290 = vld [vmem:[#allocation7 + $0xc] sm:$0xf]
        %v291 = vld [vmem:[#allocation7 + $0x10] sm:$0xf]
        %v292 = vld [vmem:[#allocation7 + $0x14] sm:$0xf]
        %v293 = vld [vmem:[#allocation7 + $0x18] sm:$0xf]
        %v294 = vld [vmem:[#allocation7 + $0x1c] sm:$0xf]
        %v295 = vld [vmem:[#allocation7 + $0x20] sm:$0xf]
        %v296 = vld [vmem:[#allocation7 + $0x24] sm:$0xf]
        %v297 = vld [vmem:[#allocation7 + $0x28] sm:$0xf]
        %v298 = vld [vmem:[#allocation7 + $0x2c] sm:$0xf]
        %v299 = vld [vmem:[#allocation7 + $0x30] sm:$0xf]
        %v300 = vld [vmem:[#allocation7 + $0x34] sm:$0xf]
        %v301 = vld [vmem:[#allocation7 + $0x38] sm:$0xf]
        %v302 = vld [vmem:[#allocation7 + $0x3c] sm:$0xf]
        %v319 = vunpack.c.l.b16 %v271
        %v320 = vunpack.c.l.b16 %v272
        %v321 = vunpack.c.l.b16 %v273
        %v322 = vunpack.c.l.b16 %v274
        %v323 = vunpack.c.l.b16 %v275
        %v324 = vunpack.c.l.b16 %v276
        %v325 = vunpack.c.l.b16 %v277
        %v326 = vunpack.c.l.b16 %v278
        %v327 = vunpack.c.l.b16 %v279
        %v328 = vunpack.c.l.b16 %v280
        %v329 = vunpack.c.l.b16 %v281
        %v330 = vunpack.c.l.b16 %v282
        %v331 = vunpack.c.l.b16 %v283
        %v332 = vunpack.c.l.b16 %v284
        %v333 = vunpack.c.l.b16 %v285
        %v334 = vunpack.c.l.b16 %v286
        %v335 = vpack.c.b16 %v320, %v319
        %v336 = vpack.c.b16 %v322, %v321
        %v337 = vpack.c.b16 %v324, %v323
        %v338 = vpack.c.b16 %v326, %v325
        %v339 = vpack.c.b16 %v328, %v327
        %v340 = vpack.c.b16 %v330, %v329
        %v341 = vpack.c.b16 %v332, %v331
        %v342 = vpack.c.b16 %v334, %v333
        %v367 = vunpack.c.l.b16 %v287
        %v368 = vunpack.c.l.b16 %v288
        %v369 = vunpack.c.l.b16 %v289
        %v370 = vunpack.c.l.b16 %v290
        %v371 = vunpack.c.l.b16 %v291
        %v372 = vunpack.c.l.b16 %v292
        %v373 = vunpack.c.l.b16 %v293
        %v374 = vunpack.c.l.b16 %v294
        %v375 = vunpack.c.l.b16 %v295
        %v376 = vunpack.c.l.b16 %v296
        %v377 = vunpack.c.l.b16 %v297
        %v378 = vunpack.c.l.b16 %v298
        %v379 = vunpack.c.l.b16 %v299
        %v380 = vunpack.c.l.b16 %v300
        %v381 = vunpack.c.l.b16 %v301
        %v382 = vunpack.c.l.b16 %v302
        %v383 = vpack.c.b16 %v368, %v367
        %v384 = vpack.c.b16 %v370, %v369
        %v385 = vpack.c.b16 %v372, %v371
        %v386 = vpack.c.b16 %v374, %v373
        %v387 = vpack.c.b16 %v376, %v375
        %v388 = vpack.c.b16 %v378, %v377
        %v389 = vpack.c.b16 %v380, %v379
        %v390 = vpack.c.b16 %v382, %v381
        %399 = vmatprep.subr.bf16.mxu0 0
        %400 = vmatpush1.bf16.msra.mxu0 %v390
        %401 = vmatprep.subr.bf16.mxu0 0
        %402 = vmatpush1.bf16.msra.mxu0 %v389
        %403 = vmatprep.subr.bf16.mxu0 0
        %404 = vmatpush1.bf16.msra.mxu0 %v388
        %405 = vmatprep.subr.bf16.mxu0 0
        %406 = vmatpush1.bf16.msra.mxu0 %v387
        %407 = vmatprep.subr.bf16.mxu0 0
        %408 = vmatpush1.bf16.msra.mxu0 %v386
        %409 = vmatprep.subr.bf16.mxu0 0
        %410 = vmatpush1.bf16.msra.mxu0 %v385
        %411 = vmatprep.subr.bf16.mxu0 0
        %412 = vmatpush1.bf16.msra.mxu0 %v384
        %413 = vmatprep.subr.bf16.mxu0 0
        %414 = vmatpush1.bf16.msra.mxu0 %v383
        %415 = vmatprep.subr.bf16.mxu0 0
        %416 = vmatpush2.bf16.msra.mxu0 0
        %417 = vmatprep.subr.bf16.mxu0 0
        %418 = vmatpush2.bf16.msra.mxu0 0
        %419 = vmatprep.subr.bf16.mxu0 0
        %420 = vmatpush2.bf16.msra.mxu0 0
        %421 = vmatprep.subr.bf16.mxu0 0
        %422 = vmatpush2.bf16.msra.mxu0 0
        %423 = vmatprep.subr.bf16.mxu0 0
        %424 = vmatpush2.bf16.msra.mxu0 0
        %425 = vmatprep.subr.bf16.mxu0 0
        %426 = vmatpush2.bf16.msra.mxu0 0
        %427 = vmatprep.subr.bf16.mxu0 0
        %428 = vmatpush2.bf16.msra.mxu0 0
        %429 = vmatprep.subr.bf16.mxu0 0
        %430 = vmatpush2.bf16.msra.mxu0 0
        %431 = vmatprep.mubr.bf16.mxu0 0
        %432 = vmatmul.mubr.bf16.gmra.mxu0 %v335
        %v433 = vpop.f32.mrf.mxu0
        %v434 = vadd.f32 0.0, %v433
        %v435 = vpop.f32.mrf.mxu0
        %v436 = vpop.f32.mrf.mxu0
        %v437 = vadd.f32 0.0, %v436
        %v438 = vpop.f32.mrf.mxu0
        %439 = vmatprep.mubr.bf16.mxu0 0
        %440 = vmatmul.mubr.bf16.gmra.mxu0 %v336
        %v441 = vpop.f32.mrf.mxu0
        %v442 = vadd.f32 0.0, %v441
        %v443 = vpop.f32.mrf.mxu0
        %v444 = vpop.f32.mrf.mxu0
        %v445 = vadd.f32 0.0, %v444
        %v446 = vpop.f32.mrf.mxu0
        %447 = vmatprep.mubr.bf16.mxu0 0
        %448 = vmatmul.mubr.bf16.gmra.mxu0 %v337
        %v449 = vpop.f32.mrf.mxu0
        %v450 = vadd.f32 0.0, %v449
        %v451 = vpop.f32.mrf.mxu0
        %v452 = vpop.f32.mrf.mxu0
        %v453 = vadd.f32 0.0, %v452
        %v454 = vpop.f32.mrf.mxu0
        %455 = vmatprep.mubr.bf16.mxu0 0
        %456 = vmatmul.mubr.bf16.gmra.mxu0 %v338
        %v457 = vpop.f32.mrf.mxu0
        %v458 = vadd.f32 0.0, %v457
        %v459 = vpop.f32.mrf.mxu0
        %v460 = vpop.f32.mrf.mxu0
        %v461 = vadd.f32 0.0, %v460
        %v462 = vpop.f32.mrf.mxu0
        %463 = vmatprep.mubr.bf16.mxu0 0
        %464 = vmatmul.mubr.bf16.gmra.mxu0 %v339
        %v465 = vpop.f32.mrf.mxu0
        %v466 = vadd.f32 0.0, %v465
        %v467 = vpop.f32.mrf.mxu0
        %v468 = vpop.f32.mrf.mxu0
        %v469 = vadd.f32 0.0, %v468
        %v470 = vpop.f32.mrf.mxu0
        %471 = vmatprep.mubr.bf16.mxu0 0
        %472 = vmatmul.mubr.bf16.gmra.mxu0 %v340
        %v473 = vpop.f32.mrf.mxu0
        %v474 = vadd.f32 0.0, %v473
        %v475 = vpop.f32.mrf.mxu0
        %v476 = vpop.f32.mrf.mxu0
        %v477 = vadd.f32 0.0, %v476
        %v478 = vpop.f32.mrf.mxu0
        %479 = vmatprep.mubr.bf16.mxu0 0
        %480 = vmatmul.mubr.bf16.gmra.mxu0 %v341
        %v481 = vpop.f32.mrf.mxu0
        %v482 = vadd.f32 0.0, %v481
        %v483 = vpop.f32.mrf.mxu0
        %v484 = vpop.f32.mrf.mxu0
        %v485 = vadd.f32 0.0, %v484
        %v486 = vpop.f32.mrf.mxu0
        %487 = vmatprep.mubr.bf16.mxu0 0
        %488 = vmatmul.mubr.bf16.gmra.mxu0 %v342
        %v489 = vpop.f32.mrf.mxu0
        %v490 = vadd.f32 0.0, %v489
        %v491 = vpop.f32.mrf.mxu0
        %v492 = vpop.f32.mrf.mxu0
        %v493 = vadd.f32 0.0, %v492
        %v494 = vpop.f32.mrf.mxu0
        %495 = vdwg.mxu0
        %v496 = vpack.c.bf16 %v437, %v434
        %v497 = vpack.c.bf16 %v445, %v442
        %v498 = vpack.c.bf16 %v453, %v450
        %v499 = vpack.c.bf16 %v461, %v458
        %v500 = vpack.c.bf16 %v469, %v466
        %v501 = vpack.c.bf16 %v477, %v474
        %v502 = vpack.c.bf16 %v485, %v482
        %v503 = vpack.c.bf16 %v493, %v490
        %v504 = vld [vmem:[%s227] sm:$0xf]
        %v505 = vld [vmem:[%s227 + $0x4] sm:$0xf]
        %v506 = vld [vmem:[%s227 + $0x8] sm:$0xf]
        %v507 = vld [vmem:[%s227 + $0xc] sm:$0xf]
        %v508 = vld [vmem:[%s227 + $0x10] sm:$0xf]
        %v509 = vld [vmem:[%s227 + $0x14] sm:$0xf]
        %v510 = vld [vmem:[%s227 + $0x18] sm:$0xf]
        %v511 = vld [vmem:[%s227 + $0x1c] sm:$0xf]
        %v512 = vld [vmem:[%s227 + $0x20] sm:$0xf]
        %v513 = vld [vmem:[%s227 + $0x24] sm:$0xf]
        %v514 = vld [vmem:[%s227 + $0x28] sm:$0xf]
        %v515 = vld [vmem:[%s227 + $0x2c] sm:$0xf]
        %v516 = vld [vmem:[%s227 + $0x30] sm:$0xf]
        %v517 = vld [vmem:[%s227 + $0x34] sm:$0xf]
        %v518 = vld [vmem:[%s227 + $0x38] sm:$0xf]
        %v519 = vld [vmem:[%s227 + $0x3c] sm:$0xf]
        %v520 = vld [vmem:[%s3] sm:$0x1]
        %v522 = vlaneseq
        %v523 = vshrl.u32 %v522, 7
        %v524 = vsub.s32 0, %v523
        %v525 = vrot.slane %v520, %v524
        %v543 = vunpack.c.l.b16 %v504
        %v544 = vunpack.c.l.b16 %v505
        %v545 = vunpack.c.l.b16 %v506
        %v546 = vunpack.c.l.b16 %v507
        %v547 = vunpack.c.l.b16 %v508
        %v548 = vunpack.c.l.b16 %v509
        %v549 = vunpack.c.l.b16 %v510
        %v550 = vunpack.c.l.b16 %v511
        %v551 = vunpack.c.l.b16 %v512
        %v552 = vunpack.c.l.b16 %v513
        %v553 = vunpack.c.l.b16 %v514
        %v554 = vunpack.c.l.b16 %v515
        %v555 = vunpack.c.l.b16 %v516
        %v556 = vunpack.c.l.b16 %v517
        %v557 = vunpack.c.l.b16 %v518
        %v558 = vunpack.c.l.b16 %v519
        %v559 = vpack.c.b16 %v544, %v543
        %v560 = vpack.c.b16 %v546, %v545
        %v561 = vpack.c.b16 %v548, %v547
        %v562 = vpack.c.b16 %v550, %v549
        %v563 = vpack.c.b16 %v552, %v551
        %v564 = vpack.c.b16 %v554, %v553
        %v565 = vpack.c.b16 %v556, %v555
        %v566 = vpack.c.b16 %v558, %v557
        %575 = vmatprep.subr.bf16.mxu0 0
        %576 = vmatpush1.bf16.msra.mxu0 %v503
        %577 = vmatprep.subr.bf16.mxu0 0
        %578 = vmatpush1.bf16.msra.mxu0 %v502
        %579 = vmatprep.subr.bf16.mxu0 0
        %580 = vmatpush1.bf16.msra.mxu0 %v501
        %581 = vmatprep.subr.bf16.mxu0 0
        %582 = vmatpush1.bf16.msra.mxu0 %v500
        %583 = vmatprep.subr.bf16.mxu0 0
        %584 = vmatpush1.bf16.msra.mxu0 %v499
        %585 = vmatprep.subr.bf16.mxu0 0
        %586 = vmatpush1.bf16.msra.mxu0 %v498
        %587 = vmatprep.subr.bf16.mxu0 0
        %588 = vmatpush1.bf16.msra.mxu0 %v497
        %589 = vmatprep.subr.bf16.mxu0 0
        %590 = vmatpush1.bf16.msra.mxu0 %v496
        %591 = vmatprep.subr.bf16.mxu0 0
        %592 = vmatpush2.bf16.msra.mxu0 0
        %593 = vmatprep.subr.bf16.mxu0 0
        %594 = vmatpush2.bf16.msra.mxu0 0
        %595 = vmatprep.subr.bf16.mxu0 0
        %596 = vmatpush2.bf16.msra.mxu0 0
        %597 = vmatprep.subr.bf16.mxu0 0
        %598 = vmatpush2.bf16.msra.mxu0 0
        %599 = vmatprep.subr.bf16.mxu0 0
        %600 = vmatpush2.bf16.msra.mxu0 0
        %601 = vmatprep.subr.bf16.mxu0 0
        %602 = vmatpush2.bf16.msra.mxu0 0
        %603 = vmatprep.subr.bf16.mxu0 0
        %604 = vmatpush2.bf16.msra.mxu0 0
        %605 = vmatprep.subr.bf16.mxu0 0
        %606 = vmatpush2.bf16.msra.mxu0 0
        %607 = vmatprep.mubr.bf16.mxu0 0
        %608 = vmatmul.mubr.bf16.gmra.mxu0 %v559
        %v609 = vpop.f32.mrf.mxu0
        %v610 = vadd.f32 %v525, %v609
        %v611 = vpop.f32.mrf.mxu0
        %v612 = vpop.f32.mrf.mxu0
        %v613 = vadd.f32 %v525, %v612
        %v614 = vpop.f32.mrf.mxu0
        %615 = vmatprep.mubr.bf16.mxu0 0
        %616 = vmatmul.mubr.bf16.gmra.mxu0 %v560
        %v617 = vpop.f32.mrf.mxu0
        %v618 = vadd.f32 %v525, %v617
        %v619 = vpop.f32.mrf.mxu0
        %v620 = vpop.f32.mrf.mxu0
        %v621 = vadd.f32 %v525, %v620
        %v622 = vpop.f32.mrf.mxu0
        %623 = vmatprep.mubr.bf16.mxu0 0
        %624 = vmatmul.mubr.bf16.gmra.mxu0 %v561
        %v625 = vpop.f32.mrf.mxu0
        %v626 = vadd.f32 %v525, %v625
        %v627 = vpop.f32.mrf.mxu0
        %v628 = vpop.f32.mrf.mxu0
        %v629 = vadd.f32 %v525, %v628
        %v630 = vpop.f32.mrf.mxu0
        %631 = vmatprep.mubr.bf16.mxu0 0
        %632 = vmatmul.mubr.bf16.gmra.mxu0 %v562
        %v633 = vpop.f32.mrf.mxu0
        %v634 = vadd.f32 %v525, %v633
        %v635 = vpop.f32.mrf.mxu0
        %v636 = vpop.f32.mrf.mxu0
        %v637 = vadd.f32 %v525, %v636
        %v638 = vpop.f32.mrf.mxu0
        %639 = vmatprep.mubr.bf16.mxu0 0
        %640 = vmatmul.mubr.bf16.gmra.mxu0 %v563
        %v641 = vpop.f32.mrf.mxu0
        %v642 = vadd.f32 %v525, %v641
        %v643 = vpop.f32.mrf.mxu0
        %v644 = vpop.f32.mrf.mxu0
        %v645 = vadd.f32 %v525, %v644
        %v646 = vpop.f32.mrf.mxu0
        %647 = vmatprep.mubr.bf16.mxu0 0
        %648 = vmatmul.mubr.bf16.gmra.mxu0 %v564
        %v649 = vpop.f32.mrf.mxu0
        %v650 = vadd.f32 %v525, %v649
        %v651 = vpop.f32.mrf.mxu0
        %v652 = vpop.f32.mrf.mxu0
        %v653 = vadd.f32 %v525, %v652
        %v654 = vpop.f32.mrf.mxu0
        %655 = vmatprep.mubr.bf16.mxu0 0
        %656 = vmatmul.mubr.bf16.gmra.mxu0 %v565
        %v657 = vpop.f32.mrf.mxu0
        %v658 = vadd.f32 %v525, %v657
        %v659 = vpop.f32.mrf.mxu0
        %v660 = vpop.f32.mrf.mxu0
        %v661 = vadd.f32 %v525, %v660
        %v662 = vpop.f32.mrf.mxu0
        %663 = vmatprep.mubr.bf16.mxu0 0
        %664 = vmatmul.mubr.bf16.gmra.mxu0 %v566
        %v665 = vpop.f32.mrf.mxu0
        %v666 = vadd.f32 %v525, %v665
        %v667 = vpop.f32.mrf.mxu0
        %v668 = vpop.f32.mrf.mxu0
        %v669 = vadd.f32 %v525, %v668
        %v670 = vpop.f32.mrf.mxu0
        %671 = vdwg.mxu0
        %v672 = vpack.c.bf16 %v613, %v610
        %v673 = vpack.c.bf16 %v621, %v618
        %v674 = vpack.c.bf16 %v629, %v626
        %v675 = vpack.c.bf16 %v637, %v634
        %v676 = vpack.c.bf16 %v645, %v642
        %v677 = vpack.c.bf16 %v653, %v650
        %v678 = vpack.c.bf16 %v661, %v658
        %v679 = vpack.c.bf16 %v669, %v666
        %v688 = vunpack.c.l.b16 %v672
        %v689 = vunpack.c.h.b16 %v672
        %v690 = vunpack.c.l.b16 %v673
        %v691 = vunpack.c.h.b16 %v673
        %v692 = vunpack.c.l.b16 %v674
        %v693 = vunpack.c.h.b16 %v674
        %v694 = vunpack.c.l.b16 %v675
        %v695 = vunpack.c.h.b16 %v675
        %v696 = vunpack.c.l.b16 %v676
        %v697 = vunpack.c.h.b16 %v676
        %v698 = vunpack.c.l.b16 %v677
        %v699 = vunpack.c.h.b16 %v677
        %v700 = vunpack.c.l.b16 %v678
        %v701 = vunpack.c.h.b16 %v678
        %v702 = vunpack.c.l.b16 %v679
        %v703 = vunpack.c.h.b16 %v679
        %v704 = vpack.c.b16 %v688, %v688
        %v705 = vpack.c.b16 %v689, %v689
        %v706 = vpack.c.b16 %v690, %v690
        %v707 = vpack.c.b16 %v691, %v691
        %v708 = vpack.c.b16 %v692, %v692
        %v709 = vpack.c.b16 %v693, %v693
        %v710 = vpack.c.b16 %v694, %v694
        %v711 = vpack.c.b16 %v695, %v695
        %v712 = vpack.c.b16 %v696, %v696
        %v713 = vpack.c.b16 %v697, %v697
        %v714 = vpack.c.b16 %v698, %v698
        %v715 = vpack.c.b16 %v699, %v699
        %v716 = vpack.c.b16 %v700, %v700
        %v717 = vpack.c.b16 %v701, %v701
        %v718 = vpack.c.b16 %v702, %v702
        %v719 = vpack.c.b16 %v703, %v703
        %736 = vst [vmem:[%s269] sm:$0xf] %v704
        %737 = vst [vmem:[%s269 + $0x4] sm:$0xf] %v705
        %738 = vst [vmem:[%s269 + $0x8] sm:$0xf] %v706
        %739 = vst [vmem:[%s269 + $0xc] sm:$0xf] %v707
        %740 = vst [vmem:[%s269 + $0x10] sm:$0xf] %v708
        %741 = vst [vmem:[%s269 + $0x14] sm:$0xf] %v709
        %742 = vst [vmem:[%s269 + $0x18] sm:$0xf] %v710
        %743 = vst [vmem:[%s269 + $0x1c] sm:$0xf] %v711
        %744 = vst [vmem:[%s269 + $0x20] sm:$0xf] %v712
        %745 = vst [vmem:[%s269 + $0x24] sm:$0xf] %v713
        %746 = vst [vmem:[%s269 + $0x28] sm:$0xf] %v714
        %747 = vst [vmem:[%s269 + $0x2c] sm:$0xf] %v715
        %748 = vst [vmem:[%s269 + $0x30] sm:$0xf] %v716
        %749 = vst [vmem:[%s269 + $0x34] sm:$0xf] %v717
        %750 = vst [vmem:[%s269 + $0x38] sm:$0xf] %v718
        %751 = vst [vmem:[%s269 + $0x3c] sm:$0xf] %v719
        %s752 = sand.u32 %s126, 1
        %s753 = scalar_lea.sflag [#allocation4], %s752
        %s754 = sand.u32 %s126, 1
        %s755 = smul.addr %s754, 64
        %s756 = scalar_lea.vmem [#allocation8], %s755
        // Predicated region
        $region49: #{tpu_custom_call.1} parent=35 // pred_check
          %p757 = pneg %p136
        $region50: #{tpu_custom_call.1} parent=35 // pred_check_branch
          %759 = sbr.rel (%p757) target = $region52
        $region51: #{tpu_custom_call.1} parent=35 // pred_region
          %s761 = ssub.s32 1024, 1024
          %762 = vsyncadd %s753, %s761
          %s763 = smul.addr %s24, 16
          %s764 = smul.addr %s763, 64
          %s765 = scalar_lea.hbm %s4, %s764
          %s766 = sshll.u32 %s756, 4
          %s767 = int_to_ptr.vmem [resolvable:$true] %s766
          %772 = dma.vmem_to_hbm [thread:$0]  %s767, 1024, %s765, %s753, 64, 64, 4
        $region52: #{tpu_custom_call.1} parent=35 // pred_fallthru
          _
      $region36: #{tpu_custom_call.1} parent=5 // pred_fallthru
        _
      %p773 = scmp.le.s32.totalorder 2, %s19
      // Predicated region
      $region53: #{tpu_custom_call.1} parent=5 // pred_check
        %p774 = pneg %p773
      $region54: #{tpu_custom_call.1} parent=5 // pred_check_branch
        %776 = sbr.rel (%p774) target = $region56
      $region55: #{tpu_custom_call.1} parent=5 // pred_region
        %s777 = ssub.s32 %s19, 2
        // Predicated region
        $region57: #{tpu_custom_call.1} parent=55 // pred_check
          %p778 = pneg %p142
        $region58: #{tpu_custom_call.1} parent=55 // pred_check_branch
          %780 = sbr.rel (%p778) target = $region60
        $region59: #{tpu_custom_call.1} parent=55 // pred_region
          %s781 = sand.u32 %s127, 1
          %s782 = scalar_lea.sflag [#allocation4], %s781
          %s783 = sand.u32 %s127, 1
          %s784 = smul.addr %s783, 64
          %s785 = scalar_lea.vmem [#allocation8], %s784
          %786 = dma.done %s782, 1024
        $region60: #{tpu_custom_call.1} parent=55 // pred_fallthru
          _
      $region56: #{tpu_custom_call.1} parent=5 // pred_fallthru
        _
    $region6: #{tpu_custom_call.1} parent=1 // loop_footer
      %s23 = sadd.s32 1, %s19
    $region7: #{tpu_custom_call.1} parent=1 // loop_footer_branch
      %18 = sbr.rel target = $region3
    $region8: #{tpu_custom_call.1} parent=1 // loop_exit
      _
    %787 = vsyncpa [#allocation3], 1
    %s788 = scalar_lea.sflag [#allocation3], 1
    %789 = vsyncpa %s788, 1
    %790 = vsyncpa [#allocation6], 1
    %s791 = scalar_lea.sflag [#allocation6], 1
    %792 = vsyncpa %s791, 1
    %793 = vsyncpa [#allocation4], 1
    %s794 = scalar_lea.sflag [#allocation4], 1
    %795 = vsyncpa %s794, 1

</llo_original>
